<compile_context>
chip_gen: v5e
topology: v5e:2x2
jax: 0.10.0
libtpu: 0.0.40
codegen_flags: <defaults>
</compile_context>

<pallas_src>
import jax
import jax.numpy as jnp
from jax import lax
from jax.experimental import pallas as pl
from jax.experimental.pallas import tpu as pltpu

_MIB = 1024 * 1024


# --------------------------------------------------------------------------- #
# Kernels
# --------------------------------------------------------------------------- #
def _spatial_softmax_conv_kernel(x_ref, w_ref, pos3_ref, out_ref):
    # x_ref:    (Bt, C, HW)  input dtype  - slab of flattened feature maps
    # w_ref:    (K, C)       f32          - 1x1 conv weight (bias omitted: it
    #                                       is constant over the softmax axis
    #                                       and therefore cancels)
    # pos3_ref: (HW, 3)      f32          - columns [pos_x, pos_y, 1]
    # out_ref:  (Bt, K, 2)   f32          - [...,0]=keypoint_x, [...,1]=keypoint_y
    w = w_ref[...]            # hoisted out of the batch loop
    pos3 = pos3_ref[...]
    nb = x_ref.shape[0]

    def body(i, carry):
        xi = x_ref[i].astype(jnp.float32)                        # per-tile upcast (no-op for f32)
        # 1x1 convolution == channel-mixing matmul on the MXU.
        h = jnp.dot(w, xi, preferred_element_type=jnp.float32)   # (K, HW)
        # Numerically stable softmax numerator over the flattened spatial axis.
        m = jnp.max(h, axis=-1, keepdims=True)                   # (K, 1)  XLU
        e = jnp.exp(h - m)                                        # (K, HW) EUP
        # One MXU dot yields unnormalized keypoints AND the softmax denominator
        # (ones column of pos3); no separate cross-lane sum reduction.
        kps = jnp.dot(e, pos3, preferred_element_type=jnp.float32)  # (K, 3)
        # Exact normalization: sum(pos*e)/sum(e) on a tiny (K, 2) result.
        out_ref[i] = kps[:, 0:2] / kps[:, 2:3]
        return carry

    lax.fori_loop(0, nb, body, 0, unroll=min(nb, 8))


def _spatial_softmax_noconv_kernel(x_ref, pos3_ref, out_ref):
    # Same as above but the module's conv is skipped (num_kp == in_c),
    # so there is no weight matmul (and no weight DMA) at all.
    pos3 = pos3_ref[...]
    nb = x_ref.shape[0]

    def body(i, carry):
        h = x_ref[i].astype(jnp.float32)                          # (C, HW)
        m = jnp.max(h, axis=-1, keepdims=True)
        e = jnp.exp(h - m)
        kps = jnp.dot(e, pos3, preferred_element_type=jnp.float32)  # (C, 3)
        out_ref[i] = kps[:, 0:2] / kps[:, 2:3]
        return carry

    lax.fori_loop(0, nb, body, 0, unroll=min(nb, 8))


# --------------------------------------------------------------------------- #
# Tiling / VMEM budgets
# --------------------------------------------------------------------------- #
def _vmem_config():
    """Generation-aware VMEM budgets.

    v5e / v6e: 128 MiB physical VMEM, one TensorCore -> big slabs, no reason
    to split the grid.  v7x-like: 64 MiB physical / ~32 MiB scoped, two
    TensorCores -> conservative slab, keep >= 2 grid steps so both cores get
    work.  Falls back to the conservative setting if the query is unavailable.
    """
    phys = None
    try:
        phys = getattr(pltpu.get_tpu_info(), "vmem_capacity_bytes", None)
    except Exception:
        phys = None
    if phys is not None and phys >= 128 * _MIB:          # v5e / v6e (/ v5p)
        return {"slab_budget": 40 * _MIB, "vmem_limit": 96 * _MIB, "multi_tc": False}
    # v7x-like or unknown: stay well inside 64 MiB physical / 32 MiB scoped.
    return {"slab_budget": 12 * _MIB, "vmem_limit": 30 * _MIB, "multi_tc": True}


def _pick_block_b(B, C, HW, x_itemsize, slab_budget, multi_tc):
    """Batch elements per grid step: largest double-buffered input slab that
    fits the budget; on multi-TensorCore chips keep >= 2 grid steps where
    possible so the 'parallel' axis can be sharded across cores."""
    per_b = max(1, C * HW * x_itemsize * 2)   # x slab, double-buffered by BlockSpec
    bt = max(1, min(B, slab_budget // per_b))
    if multi_tc:
        while bt > 1 and (B // bt) < 2:
            bt -= 1
    while B % bt != 0:                        # block shape must tile B exactly
        bt -= 1
    return bt


# --------------------------------------------------------------------------- #
# Wrapper
# --------------------------------------------------------------------------- #
def spatial_softmax(x, weight, bias, pos, num_kp=None, *, block_b=None):
    """SpatialSoftmax forward.

    x: (B, C, H, W).  weight: (num_kp, C) 1x1-conv weight (or None).
    bias: (num_kp,) conv bias or None -- accepted for interface parity but not
    used by the kernel, since a per-channel bias is constant along the softmax
    axis and softmax(h + b) == softmax(h) leaves the keypoints unchanged.
    pos: (2, H*W) constant coordinate grid.  Returns (B, 2*K) keypoints with
    K = num_kp when the conv applies (num_kp != C), else C.
    """
    del bias  # cancels inside the softmax; see docstring.
    B, C, H, W = x.shape
    HW = H * W
    apply_conv = (num_kp is not None) and (num_kp != C)
    K = num_kp if apply_conv else C

    # No dtype cast here: the kernel reads x as-is (avoids an extra HBM pass).
    x_flat = x.reshape(B, C, HW)
    # Constant grid (HW, 3) = [pos_x, pos_y, 1], pre-transposed once so the
    # kernel never transposes the large attention tensor; the ones column
    # folds sum(e) into the same MXU dot.
    pos3 = jnp.concatenate(
        [jnp.transpose(pos.astype(jnp.float32)), jnp.ones((HW, 1), jnp.float32)],
        axis=1,
    )

    cfg = _vmem_config()
    if block_b is None:
        block_b = _pick_block_b(B, C, HW, jnp.dtype(x_flat.dtype).itemsize,
                                cfg["slab_budget"], cfg["multi_tc"])
    grid = (B // block_b,)

    cparams = pltpu.CompilerParams(
        dimension_semantics=("parallel",),
        vmem_limit_bytes=cfg["vmem_limit"],
    )
    out_shape = jax.ShapeDtypeStruct((B, K, 2), jnp.float32)

    if apply_conv:
        w = weight.reshape(K, C).astype(jnp.float32)
        out = pl.pallas_call(
            _spatial_softmax_conv_kernel,
            out_shape=out_shape,
            grid_spec=pltpu.PrefetchScalarGridSpec(
                num_scalar_prefetch=0,
                grid=grid,
                in_specs=[
                    pl.BlockSpec((block_b, C, HW), lambda i: (i, 0, 0)),
                    pl.BlockSpec((K, C), lambda i: (0, 0)),
                    pl.BlockSpec((HW, 3), lambda i: (0, 0)),
                ],
                out_specs=pl.BlockSpec((block_b, K, 2), lambda i: (i, 0, 0)),
            ),
            compiler_params=cparams,
        )(x_flat, w, pos3)
    else:
        out = pl.pallas_call(
            _spatial_softmax_noconv_kernel,
            out_shape=out_shape,
            grid_spec=pltpu.PrefetchScalarGridSpec(
                num_scalar_prefetch=0,
                grid=grid,
                in_specs=[
                    pl.BlockSpec((block_b, C, HW), lambda i: (i, 0, 0)),
                    pl.BlockSpec((HW, 3), lambda i: (0, 0)),
                ],
                out_specs=pl.BlockSpec((block_b, K, 2), lambda i: (i, 0, 0)),
            ),
            compiler_params=cparams,
        )(x_flat, pos3)

    # (B, K, 2) -> (B, 2, K) -> (B, 2K) reproduces cat([keypoint_x, keypoint_y], dim=1).
    # This re-layout touches only B*K*2 floats; doing it in-kernel would need a
    # per-batch sublane->lane relayout for negligible byte savings.
    return out.transpose(0, 2, 1).reshape(B, 2 * K)


def make_pos_grid(in_h, in_w):
    """Reproduces the module's pos_x/pos_y buffers exactly (torch 'ij' meshgrid)."""
    lin_w = jnp.linspace(-1.0, 1.0, in_w, dtype=jnp.float32)
    lin_h = jnp.linspace(-1.0, 1.0, in_h, dtype=jnp.float32)
    pos_x, pos_y = jnp.meshgrid(lin_w, lin_h, indexing="ij")   # (in_w, in_h)
    pos_x = pos_x.reshape(1, in_w * in_h)
    pos_y = pos_y.reshape(1, in_w * in_h)
    return jnp.concatenate([pos_x, pos_y], axis=0)             # (2, HW)


def _reference(x, weight, bias, pos, num_kp):
    """Pure-JAX fp32 reference mirroring the PyTorch forward (bias included)."""
    B, C, H, W = x.shape
    x_flat = x.reshape(B, C, H * W).astype(jnp.float32)
    apply_conv = (num_kp is not None) and (num_kp != C)
    if apply_conv:
        K = num_kp
        h = jnp.einsum("kc,bcs->bks",
                       weight.reshape(K, C).astype(jnp.float32), x_flat,
                       precision=jax.lax.Precision.HIGHEST)
        h = h + bias.reshape(1, K, 1).astype(jnp.float32)
    else:
        K = C
        h = x_flat
    attn = jax.nn.softmax(h, axis=-1)                          # (B, K, HW)
    kx = jnp.sum(pos[0] * attn, axis=-1)                       # (B, K)
    ky = jnp.sum(pos[1] * attn, axis=-1)
    return jnp.concatenate([kx, ky], axis=1)                   # (B, 2K)


if __name__ == "__main__":
    B, C, H, W = 2, 4, 16, 16
    num_kp = 8

    key = jax.random.PRNGKey(0)
    kx_, kw_, kb_ = jax.random.split(key, 3)

    x = jax.random.normal(kx_, (B, C, H, W), dtype=jnp.float32)
    # Deterministic 1x1-conv parameters (Conv2d weight is (K, C, 1, 1) -> (K, C)).
    fan_in = float(C)  # kernel_size = 1
    bound = 1.0 / (fan_in ** 0.5)
    weight = jax.random.uniform(kw_, (num_kp, C), jnp.float32, -bound, bound)
    bias = jax.random.uniform(kb_, (num_kp,), jnp.float32, -bound, bound)

    pos = make_pos_grid(H, W)

    # Path 1: num_kp != in_c -> 1x1 conv + spatial softmax.
    out = spatial_softmax(x, weight, bias, pos, num_kp)
    out = jax.block_until_ready(out)
    ref = _reference(x, weight, bias, pos, num_kp)
    assert out.shape == (B, 2 * num_kp), out.shape
    # All-f32 path; tolerance only needs to cover possible reduced-precision
    # MXU passes for f32 operands (and the softmax-invariant bias drop).
    assert jnp.allclose(out, ref, atol=2e-3, rtol=2e-3), (out, ref)

    # Path 2: num_kp == in_c -> the module skips the conv; so does the kernel.
    out2 = spatial_softmax(x, None, None, pos, C)
    out2 = jax.block_until_ready(out2)
    ref2 = _reference(x, None, None, pos, C)
    assert out2.shape == (B, 2 * C), out2.shape
    assert jnp.allclose(out2, ref2, atol=2e-3, rtol=2e-3), (out2, ref2)

    print("KERNEL_OK")
</pallas_src>

<mosaic_0001>
module attributes {stable_mosaic.version = 11 : i64} {
  func.func @_spatial_softmax_conv_kernel(%arg0: i32, %arg1: memref<1x4x256xf32, #tpu.memory_space<vmem>>, %arg2: memref<8x4xf32, #tpu.memory_space<vmem>>, %arg3: memref<256x3xf32, #tpu.memory_space<vmem>>, %arg4: memref<1x8x2xf32, #tpu.memory_space<vmem>>) attributes {dimension_semantics = [#tpu.dimension_semantics<parallel>], iteration_bounds = array<i64: 2>, scalar_prefetch = 0 : i64, scratch_operands = 0 : i64, tpu.core_type = #tpu.core_type<tc>, window_params = [{transform_indices = @transform_0, window_bounds = array<i64: 1, 4, 256>}, {pipeline_mode = #tpu.pipeline_mode<synchronous>, transform_indices = @transform_1, window_bounds = array<i64: 8, 4>}, {pipeline_mode = #tpu.pipeline_mode<synchronous>, transform_indices = @transform_2, window_bounds = array<i64: 256, 3>}, {transform_indices = @transform_3, window_bounds = array<i64: 1, 8, 2>}]} {
    %c0 = arith.constant 0 : index
    %c0_0 = arith.constant 0 : index
    %0 = vector.load %arg2[%c0, %c0_0] : memref<8x4xf32, #tpu.memory_space<vmem>>, vector<8x4xf32>
    %c0_1 = arith.constant 0 : index
    %c0_2 = arith.constant 0 : index
    %1 = vector.load %arg3[%c0_1, %c0_2] : memref<256x3xf32, #tpu.memory_space<vmem>>, vector<256x3xf32>
    %c0_i32 = arith.constant 0 : i32
    %2 = arith.index_cast %c0_i32 : i32 to index
    %c0_3 = arith.constant 0 : index
    %c0_4 = arith.constant 0 : index
    %3 = vector.load %arg1[%2, %c0_3, %c0_4] : memref<1x4x256xf32, #tpu.memory_space<vmem>>, vector<1x4x256xf32>
    %4 = vector.shape_cast %3 : vector<1x4x256xf32> to vector<4x256xf32>
    %cst = arith.constant dense<0.000000e+00> : vector<8x256xf32>
    %5 = tpu.matmul %0, %4, %cst {dimension_numbers = #tpu.dot_dimension_numbers<[1], [0], [0], [1], [0, 0, 1, 1], [], []>} : vector<8x4xf32>, vector<4x256xf32>, vector<8x256xf32> -> vector<8x256xf32>
    %cst_5 = arith.constant dense<0xFF800000> : vector<8xf32>
    %6 = vector.multi_reduction <maximumf>, %5, %cst_5 [1] : vector<8x256xf32> to vector<8xf32>
    %7 = vector.shape_cast %6 : vector<8xf32> to vector<8x1xf32>
    %8 = vector.broadcast %7 : vector<8x1xf32> to vector<8x256xf32>
    %9 = arith.subf %5, %8 : vector<8x256xf32>
    %10 = math.exp %9 : vector<8x256xf32>
    %cst_6 = arith.constant dense<0.000000e+00> : vector<8x3xf32>
    %11 = tpu.matmul %10, %1, %cst_6 {dimension_numbers = #tpu.dot_dimension_numbers<[1], [0], [0], [1], [0, 0, 1, 1], [], []>} : vector<8x256xf32>, vector<256x3xf32>, vector<8x3xf32> -> vector<8x3xf32>
    %12 = vector.extract_strided_slice %11 {offsets = [0, 0], sizes = [8, 2], strides = [1, 1]} : vector<8x3xf32> to vector<8x2xf32>
    %13 = vector.extract_strided_slice %11 {offsets = [0, 2], sizes = [8, 1], strides = [1, 1]} : vector<8x3xf32> to vector<8x1xf32>
    %14 = vector.broadcast %13 : vector<8x1xf32> to vector<8x2xf32>
    %15 = arith.divf %12, %14 : vector<8x2xf32>
    %16 = arith.index_cast %c0_i32 : i32 to index
    %c0_7 = arith.constant 0 : index
    %c0_8 = arith.constant 0 : index
    %17 = vector.load %arg4[%16, %c0_7, %c0_8] : memref<1x8x2xf32, #tpu.memory_space<vmem>>, vector<1x8x2xf32>
    %18 = vector.shape_cast %17 : vector<1x8x2xf32> to vector<8x2xf32>
    %19 = vector.shape_cast %15 : vector<8x2xf32> to vector<1x8x2xf32>
    tpu.vector_store %arg4[%16, %c0_7, %c0_8], %19 {strides = array<i32>} : memref<1x8x2xf32, #tpu.memory_space<vmem>>, vector<1x8x2xf32>,
    %c1_i32 = arith.constant 1 : i32
    return
  }
  func.func @transform_0(%arg0: i32) -> (i32, i32, i32) {
    %c0_i32 = arith.constant 0 : i32
    %c0_i32_0 = arith.constant 0 : i32
    %c0_i32_1 = arith.constant 0 : i32
    return %arg0, %c0_i32, %c0_i32_0 : i32, i32, i32
  }
  func.func @transform_1(%arg0: i32) -> (i32, i32) {
    %c0_i32 = arith.constant 0 : i32
    %c0_i32_0 = arith.constant 0 : i32
    %c0_i32_1 = arith.constant 0 : i32
    return %c0_i32, %c0_i32_0 : i32, i32
  }
  func.func @transform_2(%arg0: i32) -> (i32, i32) {
    %c0_i32 = arith.constant 0 : i32
    %c0_i32_0 = arith.constant 0 : i32
    %c0_i32_1 = arith.constant 0 : i32
    return %c0_i32, %c0_i32_0 : i32, i32
  }
  func.func @transform_3(%arg0: i32) -> (i32, i32, i32) {
    %c0_i32 = arith.constant 0 : i32
    %c0_i32_0 = arith.constant 0 : i32
    %c0_i32_1 = arith.constant 0 : i32
    return %arg0, %c0_i32, %c0_i32_0 : i32, i32, i32
  }
}

</mosaic_0001>

<llo_original>
// kernel: tpu_custom_call.1
$region0: #{tpu_custom_call.1}
  #allocation0 [shape = 'u32[]', space=smem, size = 0x4, offset = 0x4, fixed_abs, tag = 'smem constant byte address 0x4 - core index']
  #allocation1 [shape = 'u32[72,128]{1,0:T(1,128)}', space=vmem, size = 0x9000, scoped, tag = 'internal scratch']
  %s0 = inlined_call_operand.vmem [shape: f32[2,4,256], index: 0, kind: input, shape index: {}]
  %s1 = inlined_call_operand.vmem [shape: f32[8,4], index: 1, kind: input, shape index: {}]
  %s2 = inlined_call_operand.vmem [shape: f32[256,3], index: 2, kind: input, shape index: {}]
  %s3 = inlined_call_operand.vmem [shape: f32[2,8,2], index: 3, kind: output, shape index: {}]
  %s4 = sld [smem:[#allocation0]]
  $region45: #{tpu_custom_call.1} parent=0
    _
  %s6 = ssub.s32 1, %s4
  %s7 = scalar_select 0, %s6, %s4
  loop: start=0, step=1, limit=4
  $region2: #{tpu_custom_call.1} parent=0 // loop_pre_header
    _
  $region3: #{tpu_custom_call.1} parent=0 // loop_header
    %s9 = sphi 0, %s13
    %p10 = scmp.ge.s32.totalorder %s9, 4
    %s19 = sphi 0, %s21
    %s22 = sphi 0, %s19
    %s23 = sphi 0, %s22
    %s39 = sphi 0, %s23
    %s43 = sphi 0, %s43
    %s45 = sphi 0, %s43
    %s46 = sphi 0, %s45
    %s60 = sphi 0, %s46
    %s64 = sphi 0, %s64
    %s66 = sphi 0, %s64
    %s67 = sphi 0, %s66
    %s81 = sphi 0, %s67
    %s87 = sphi 0, %s89
    %s90 = sphi 0, %s87
    %s91 = sphi 0, %s90
    %s107 = sphi 0, %s91
  $region4: #{tpu_custom_call.1} parent=0 // loop_header_branch
    %12 = sbr.rel (%p10) target = $region8
  $region5: #{tpu_custom_call.1} parent=0 // loop_body
    %s14 = ssub.s32 %s9, 1
    %s15 = ssub.s32 %s9, 2
    %s16 = sadd.s32 %s9, 1
    %s17 = ssub.s32 %s9, %s16
    %p18 = scmp.eq.s32.totalorder %s17, 0
    %s20 = sadd.s32 %s19, 1
    %s21 = scalar_select %p18, %s19, %s20
    %p24 = pneg %p18
    %p25 = scmp.eq.s32.totalorder %s9, 1
    %p26 = por %p24, %p25
    %p27 = scmp.ne.s32.totalorder %s19, %s22
    %p28 = scmp.eq.s32.totalorder %s9, 0
    %p29 = por %p27, %p28
    %p30 = scmp.ne.s32.totalorder %s19, %s22
    %p31 = scmp.eq.s32.totalorder %s14, 1
    %p32 = por %p30, %p31
    %p33 = scmp.ne.s32.totalorder %s22, %s23
    %p34 = scmp.eq.s32.totalorder %s14, 0
    %p35 = por %p33, %p34
    %p36 = scmp.ne.s32.totalorder %s22, %s23
    %p37 = scmp.eq.s32.totalorder %s15, 1
    %p38 = por %p36, %p37
    %p40 = scmp.ne.s32.totalorder %s23, %s39
    %p41 = scmp.eq.s32.totalorder %s15, 0
    %p42 = por %p40, %p41
    %s44 = sadd.s32 %s43, 1
    %p47 = scmp.eq.s32.totalorder %s9, 1
    %p48 = scmp.ne.s32.totalorder %s43, %s45
    %p49 = scmp.eq.s32.totalorder %s9, 0
    %p50 = por %p48, %p49
    %p51 = scmp.ne.s32.totalorder %s43, %s45
    %p52 = scmp.eq.s32.totalorder %s14, 1
    %p53 = por %p51, %p52
    %p54 = scmp.ne.s32.totalorder %s45, %s46
    %p55 = scmp.eq.s32.totalorder %s14, 0
    %p56 = por %p54, %p55
    %p57 = scmp.ne.s32.totalorder %s45, %s46
    %p58 = scmp.eq.s32.totalorder %s15, 1
    %p59 = por %p57, %p58
    %p61 = scmp.ne.s32.totalorder %s46, %s60
    %p62 = scmp.eq.s32.totalorder %s15, 0
    %p63 = por %p61, %p62
    %s65 = sadd.s32 %s64, 1
    %p68 = scmp.eq.s32.totalorder %s9, 1
    %p69 = scmp.ne.s32.totalorder %s64, %s66
    %p70 = scmp.eq.s32.totalorder %s9, 0
    %p71 = por %p69, %p70
    %p72 = scmp.ne.s32.totalorder %s64, %s66
    %p73 = scmp.eq.s32.totalorder %s14, 1
    %p74 = por %p72, %p73
    %p75 = scmp.ne.s32.totalorder %s66, %s67
    %p76 = scmp.eq.s32.totalorder %s14, 0
    %p77 = por %p75, %p76
    %p78 = scmp.ne.s32.totalorder %s66, %s67
    %p79 = scmp.eq.s32.totalorder %s15, 1
    %p80 = por %p78, %p79
    %p82 = scmp.ne.s32.totalorder %s67, %s81
    %p83 = scmp.eq.s32.totalorder %s15, 0
    %p84 = por %p82, %p83
    %s85 = ssub.s32 %s9, %s16
    %p86 = scmp.eq.s32.totalorder %s85, 0
    %s88 = sadd.s32 %s87, 1
    %s89 = scalar_select %p86, %s87, %s88
    %p92 = pneg %p86
    %p93 = scmp.eq.s32.totalorder %s9, 1
    %p94 = por %p92, %p93
    %p95 = scmp.ne.s32.totalorder %s87, %s90
    %p96 = scmp.eq.s32.totalorder %s9, 0
    %p97 = por %p95, %p96
    %p98 = scmp.ne.s32.totalorder %s87, %s90
    %p99 = scmp.eq.s32.totalorder %s14, 1
    %p100 = por %p98, %p99
    %p101 = scmp.ne.s32.totalorder %s90, %s91
    %p102 = scmp.eq.s32.totalorder %s14, 0
    %p103 = por %p101, %p102
    %p104 = scmp.ne.s32.totalorder %s90, %s91
    %p105 = scmp.eq.s32.totalorder %s15, 1
    %p106 = por %p104, %p105
    %p108 = scmp.ne.s32.totalorder %s91, %s107
    %p109 = scmp.eq.s32.totalorder %s15, 0
    %p110 = por %p108, %p109
    %p111 = scmp.le.s32.totalorder 1, %s9
    %p112 = scmp.lt.s32.totalorder %s9, 3
    %p113 = pnand %p111, %p112
    %p114 = pneg %p113
    // Predicated region
    $region9: #{tpu_custom_call.1} parent=5 // pred_check
      _
    $region10: #{tpu_custom_call.1} parent=5 // pred_check_branch
      %116 = sbr.rel (%p113) target = $region12
    $region11: #{tpu_custom_call.1} parent=5 // pred_region
      %s117 = ssub.s32 %s9, 1
      // Predicated region
      $region13: #{tpu_custom_call.1} parent=11 // pred_check
        %p118 = pneg %p56
      $region14: #{tpu_custom_call.1} parent=11 // pred_check_branch
        %120 = sbr.rel (%p118) target = $region16
      $region15: #{tpu_custom_call.1} parent=11 // pred_region
        _
      $region16: #{tpu_custom_call.1} parent=11 // pred_fallthru
        _
      // Predicated region
      $region17: #{tpu_custom_call.1} parent=11 // pred_check
        %p121 = pneg %p77
      $region18: #{tpu_custom_call.1} parent=11 // pred_check_branch
        %123 = sbr.rel (%p121) target = $region20
      $region19: #{tpu_custom_call.1} parent=11 // pred_region
        _
      $region20: #{tpu_custom_call.1} parent=11 // pred_fallthru
        _
    $region12: #{tpu_custom_call.1} parent=5 // pred_fallthru
      _
    %p124 = scmp.lt.s32.totalorder %s9, 2
    // Predicated region
    $region21: #{tpu_custom_call.1} parent=5 // pred_check
      %p125 = pneg %p124
    $region22: #{tpu_custom_call.1} parent=5 // pred_check_branch
      %127 = sbr.rel (%p125) target = $region24
    $region23: #{tpu_custom_call.1} parent=5 // pred_region
      // Predicated region
      $region25: #{tpu_custom_call.1} parent=23 // pred_check
        %p128 = pneg %p29
      $region26: #{tpu_custom_call.1} parent=23 // pred_check_branch
        %130 = sbr.rel (%p128) target = $region28
      $region27: #{tpu_custom_call.1} parent=23 // pred_region
        %p131 = scmp.lt.s32.totalorder %s9, 1
        %s132 = scalar_select %p131, %s9, 1
        %s133 = smul.addr %s132, 2
        %s134 = smul.addr %s133, 4
        %s135 = scalar_lea.vmem %s0, %s134
      $region28: #{tpu_custom_call.1} parent=23 // pred_fallthru
        _
    $region24: #{tpu_custom_call.1} parent=5 // pred_fallthru
      _
    %p136 = scmp.le.s32.totalorder 1, %s9
    %p137 = scmp.lt.s32.totalorder %s9, 3
    %p138 = pnand %p136, %p137
    %p139 = pneg %p138
    // Predicated region
    $region29: #{tpu_custom_call.1} parent=5 // pred_check
      _
    $region30: #{tpu_custom_call.1} parent=5 // pred_check_branch
      %141 = sbr.rel (%p138) target = $region32
    $region31: #{tpu_custom_call.1} parent=5 // pred_region
      %s142 = ssub.s32 %s9, 1
      %p143 = scmp.lt.s32.totalorder %s14, 1
      %s144 = scalar_select %p143, %s14, 1
      %s145 = smul.addr %s144, 2
      %s146 = smul.addr %s145, 4
      %s147 = scalar_lea.vmem %s0, %s146
      %p148 = pneg %p35
      %p149 = pneg %p32
      %p150 = pneg %p56
      %p151 = pneg %p53
      %p152 = pneg %p77
      %p153 = pneg %p74
      %p154 = pneg %p103
      %p155 = pneg %p100
      %p156 = scmp.lt.s32.totalorder %s14, 1
      %s157 = scalar_select %p156, %s14, 1
      %s158 = smul.addr %s157, 8
      %s159 = scalar_lea.vmem %s3, %s158
      %p160 = scmp.lt.s32.totalorder %s14, 1
      %s161 = scalar_select %p160, %s14, 1
      %s162 = smul.addr %s161, 2
      %s163 = smul.addr %s162, 4
      %s164 = scalar_lea.vmem %s0, %s163
      %p165 = scmp.lt.s32.totalorder %s14, 1
      %s166 = scalar_select %p165, %s14, 1
      %s167 = smul.addr %s166, 8
      %s168 = scalar_lea.vmem %s3, %s167
      %v169 = vld [vmem:[%s1] sm:$0xff]
      %v170 = vld [vmem:[%s2] sm:$0xff]
      %v171 = vld [vmem:[%s2 + $0x8] sm:$0xff]
      %v172 = vld [vmem:[%s2 + $0x10] sm:$0xff]
      %v173 = vld [vmem:[%s2 + $0x18] sm:$0xff]
      %v174 = vld [vmem:[%s2 + $0x20] sm:$0xff]
      %v175 = vld [vmem:[%s2 + $0x28] sm:$0xff]
      %v176 = vld [vmem:[%s2 + $0x30] sm:$0xff]
      %v177 = vld [vmem:[%s2 + $0x38] sm:$0xff]
      %v178 = vld [vmem:[%s2 + $0x40] sm:$0xff]
      %v179 = vld [vmem:[%s2 + $0x48] sm:$0xff]
      %v180 = vld [vmem:[%s2 + $0x50] sm:$0xff]
      %v181 = vld [vmem:[%s2 + $0x58] sm:$0xff]
      %v182 = vld [vmem:[%s2 + $0x60] sm:$0xff]
      %v183 = vld [vmem:[%s2 + $0x68] sm:$0xff]
      %v184 = vld [vmem:[%s2 + $0x70] sm:$0xff]
      %v185 = vld [vmem:[%s2 + $0x78] sm:$0xff]
      %v186 = vld [vmem:[%s2 + $0x80] sm:$0xff]
      %v187 = vld [vmem:[%s2 + $0x88] sm:$0xff]
      %v188 = vld [vmem:[%s2 + $0x90] sm:$0xff]
      %v189 = vld [vmem:[%s2 + $0x98] sm:$0xff]
      %v190 = vld [vmem:[%s2 + $0xa0] sm:$0xff]
      %v191 = vld [vmem:[%s2 + $0xa8] sm:$0xff]
      %v192 = vld [vmem:[%s2 + $0xb0] sm:$0xff]
      %v193 = vld [vmem:[%s2 + $0xb8] sm:$0xff]
      %v194 = vld [vmem:[%s2 + $0xc0] sm:$0xff]
      %v195 = vld [vmem:[%s2 + $0xc8] sm:$0xff]
      %v196 = vld [vmem:[%s2 + $0xd0] sm:$0xff]
      %v197 = vld [vmem:[%s2 + $0xd8] sm:$0xff]
      %v198 = vld [vmem:[%s2 + $0xe0] sm:$0xff]
      %v199 = vld [vmem:[%s2 + $0xe8] sm:$0xff]
      %v200 = vld [vmem:[%s2 + $0xf0] sm:$0xff]
      %v201 = vld [vmem:[%s2 + $0xf8] sm:$0xff]
      %v202 = vld [vmem:[%s164] sm:$0xff]
      %204 = vst [vmem:[#allocation1] ss:$2 sm:$0xff] %v202
      %v205 = vld.sshfl [vmem:[#allocation1] sm:$0xff pattern:$0x75316420]
      %v206 = vld.sshfl [vmem:[#allocation1 + $0x8] sm:$0xff pattern:$0x75316420]
      %vm207 = vcmask 31744
      %v209 = vsel %vm207, %v169, 0
      %vm211 = vcmask 1043456
      %v212 = vsel %vm211, %v205, 0
      %v214 = vsel %vm211, %v206, 0
      %216 = vmatpush.msra.mxu0 0.0
      %217 = vmatpush.msra.mxu0 0.0
      %218 = vmatpush.msra.mxu0 0.0
      %219 = vmatpush.msra.mxu0 0.0
      %220 = vmatpush.msra.mxu0 0.0
      %221 = vmatpush.msra.mxu0 0.0
      %222 = vmatpush.msra.mxu0 0.0
      %223 = vmatpush.msra.mxu0 0.0
      %224 = vmatpush.msra.mxu0 0.0
      %225 = vmatpush.msra.mxu0 0.0
      %226 = vmatpush.msra.mxu0 0.0
      %227 = vmatpush.msra.mxu0 0.0
      %228 = vmatpush.msra.mxu0 0.0
      %229 = vmatpush.msra.mxu0 0.0
      %230 = vmatpush.msra.mxu0 0.0
      %231 = vmatpush.msra.mxu0 %v212
      %232 = vmatmul.f32.gmra.mxu0 %v209
      %v233 = vpop.f32.mrf.mxu0
      %v234 = vadd.f32 0.0, %v233
      %235 = vdwg.mxu0
      %236 = vmatpush.msra.mxu0 0.0
      %237 = vmatpush.msra.mxu0 0.0
      %238 = vmatpush.msra.mxu0 0.0
      %239 = vmatpush.msra.mxu0 0.0
      %240 = vmatpush.msra.mxu0 0.0
      %241 = vmatpush.msra.mxu0 0.0
      %242 = vmatpush.msra.mxu0 0.0
      %243 = vmatpush.msra.mxu0 0.0
      %244 = vmatpush.msra.mxu0 0.0
      %245 = vmatpush.msra.mxu0 0.0
      %246 = vmatpush.msra.mxu0 0.0
      %247 = vmatpush.msra.mxu0 0.0
      %248 = vmatpush.msra.mxu0 0.0
      %249 = vmatpush.msra.mxu0 0.0
      %250 = vmatpush.msra.mxu0 0.0
      %251 = vmatpush.msra.mxu0 %v214
      %252 = vmatmul.f32.gmra.mxu0 %v209
      %v253 = vpop.f32.mrf.mxu0
      %v254 = vadd.f32 0.0, %v253
      %255 = vdwg.mxu0
      %v256 = vmax.f32 %v234, %v254
      %257 = vmax.xlane.f32.xlu0 %v256
      %v258 = vpop.xlane.xlu0 %257
      %v259 = vsub.f32 %v234, %v258
      %v260 = vsub.f32 %v254, %v258
      %v261 = vmul.f32 %v259, 1.442695
      %v262 = vpow.pop %v261
      %v263 = vmul.f32 %v260, 1.442695
      %v264 = vpow.pop %v263
      %265 = vmatpush.msra.mxu0 %v185
      %266 = vmatpush.msra.mxu0 %v184
      %267 = vmatpush.msra.mxu0 %v183
      %268 = vmatpush.msra.mxu0 %v182
      %269 = vmatpush.msra.mxu0 %v181
      %270 = vmatpush.msra.mxu0 %v180
      %271 = vmatpush.msra.mxu0 %v179
      %272 = vmatpush.msra.mxu0 %v178
      %273 = vmatpush.msra.mxu0 %v177
      %274 = vmatpush.msra.mxu0 %v176
      %275 = vmatpush.msra.mxu0 %v175
      %276 = vmatpush.msra.mxu0 %v174
      %277 = vmatpush.msra.mxu0 %v173
      %278 = vmatpush.msra.mxu0 %v172
      %279 = vmatpush.msra.mxu0 %v171
      %280 = vmatpush.msra.mxu0 %v170
      %281 = vmatmul.f32.gmra.mxu0 %v262
      %v282 = vpop.f32.mrf.mxu0
      %v283 = vadd.f32 0.0, %v282
      %284 = vdwg.mxu0
      %285 = vmatpush.msra.mxu0 %v201
      %286 = vmatpush.msra.mxu0 %v200
      %287 = vmatpush.msra.mxu0 %v199
      %288 = vmatpush.msra.mxu0 %v198
      %289 = vmatpush.msra.mxu0 %v197
      %290 = vmatpush.msra.mxu0 %v196
      %291 = vmatpush.msra.mxu0 %v195
      %292 = vmatpush.msra.mxu0 %v194
      %293 = vmatpush.msra.mxu0 %v193
      %294 = vmatpush.msra.mxu0 %v192
      %295 = vmatpush.msra.mxu0 %v191
      %296 = vmatpush.msra.mxu0 %v190
      %297 = vmatpush.msra.mxu0 %v189
      %298 = vmatpush.msra.mxu0 %v188
      %299 = vmatpush.msra.mxu0 %v187
      %300 = vmatpush.msra.mxu0 %v186
      %301 = vmatmul.f32.gmra.mxu0 %v264
      %v302 = vpop.f32.mrf.mxu0
      %v303 = vadd.f32 %v283, %v302
      %304 = vdwg.mxu0
      %306 = vset.pattern.permute.xlu0 2
      %307 = vperm.xlu0 %306, %v303
      %v308 = vpop.permute.xlu0 %307
      %v310 = vrcp.pop %v308
      %v311 = vmul.f32 %v308, %v310
      %v312 = vsub.f32 1.0, %v311
      %v313 = vmul.f32 %v310, %v312
      %v314 = vadd.f32 %v310, %v313
      %vm315 = vweird.f32 %v308
      %vm316 = vweird.f32 %v310
      %vm317 = vmor %vm315, %vm316
      %v318 = vsel %vm317, %v310, %v314
      %v319 = vand.u32 2147483647, %v308
      %vm320 = vcmp.eq.f32.partialorder %v319, 8.507059e+37
      %v321 = vand.u32 %v308, 2147483648
      %v322 = vor.u32 1.1754944e-38, %v321
      %v323 = vsel %vm320, %v322, %v318
      %v324 = vmul.f32 %v303, %v323
      %vm325 = vcmask 15360
      %326 = vst.msk [vmem:[%s168] sm:$0xff] %vm325, %v324
      %p327 = scmp.lt.s32.totalorder %s14, 1
      %s328 = scalar_select %p327, %s14, 1
      %s329 = smul.addr %s328, 8
      %s330 = scalar_lea.vmem %s3, %s329
      // Predicated region
      $region33: #{tpu_custom_call.1} parent=31 // pred_check
        %p331 = pneg %p100
      $region34: #{tpu_custom_call.1} parent=31 // pred_check_branch
        %333 = sbr.rel (%p331) target = $region36
      $region35: #{tpu_custom_call.1} parent=31 // pred_region
        _
      $region36: #{tpu_custom_call.1} parent=31 // pred_fallthru
        _
    $region32: #{tpu_custom_call.1} parent=5 // pred_fallthru
      _
    %p334 = scmp.le.s32.totalorder 2, %s9
    // Predicated region
    $region37: #{tpu_custom_call.1} parent=5 // pred_check
      %p335 = pneg %p334
    $region38: #{tpu_custom_call.1} parent=5 // pred_check_branch
      %337 = sbr.rel (%p335) target = $region40
    $region39: #{tpu_custom_call.1} parent=5 // pred_region
      %s338 = ssub.s32 %s9, 2
      // Predicated region
      $region41: #{tpu_custom_call.1} parent=39 // pred_check
        %p339 = pneg %p106
      $region42: #{tpu_custom_call.1} parent=39 // pred_check_branch
        %341 = sbr.rel (%p339) target = $region44
      $region43: #{tpu_custom_call.1} parent=39 // pred_region
        %p342 = scmp.lt.s32.totalorder %s15, 1
        %s343 = scalar_select %p342, %s15, 1
        %s344 = smul.addr %s343, 8
        %s345 = scalar_lea.vmem %s3, %s344
      $region44: #{tpu_custom_call.1} parent=39 // pred_fallthru
        _
    $region40: #{tpu_custom_call.1} parent=5 // pred_fallthru
      _
  $region6: #{tpu_custom_call.1} parent=0 // loop_footer
    %s13 = sadd.s32 1, %s9
  $region7: #{tpu_custom_call.1} parent=0 // loop_footer_branch
    %8 = sbr.rel target = $region3
  $region8: #{tpu_custom_call.1} parent=0 // loop_exit
    _

</llo_original>
